<compile_context>
chip_gen: v7x
topology: tpu7x:2x2x1
jax: 0.10.0
libtpu: 0.0.40
codegen_flags: <defaults>
</compile_context>

<pallas_src>
import jax
import jax.numpy as jnp
import numpy as np
from jax.experimental import pallas as pl
from jax.experimental.pallas import tpu as pltpu

IN_FEATURES = 11
HIDDEN1 = 150
HIDDEN2 = 100
OUT_FEATURES = 3

DEFAULT_TILE_B = 2048            # rows per grid step (intermediates ~5 MB @ 2048)
VMEM_LIMIT_BYTES = 32 * 1024 * 1024


def _round_up(n, m):
    return ((n + m - 1) // m) * m


def _tiling(batch, max_tile_b=DEFAULT_TILE_B):
    """Balanced batch tiling: tile_b multiple of 8, >=2 tiles when possible."""
    b8 = _round_up(max(batch, 1), 8)
    min_tiles = 2 if b8 >= 16 else 1           # keep both v7x TCs busy
    n = max(min_tiles, pl.cdiv(b8, max_tile_b))
    tile_b = _round_up(pl.cdiv(b8, n), 8)
    num_tiles = pl.cdiv(b8, tile_b)
    b_pad = num_tiles * tile_b
    return tile_b, num_tiles, b_pad


def _mlp_kernel(x_ref, w1_ref, b1_ref, w2_ref, b2_ref, w3_ref, b3_ref, o_ref):
    # Cast activations to the weight dtype (bf16 or f32) inside the kernel;
    # accumulation / bias-add / ReLU stay in f32.
    x = x_ref[...].astype(w1_ref.dtype)
    h1 = jnp.dot(x, w1_ref[...], preferred_element_type=jnp.float32)
    h1 = jnp.maximum(h1 + b1_ref[...], 0.0)

    h2 = jnp.dot(h1.astype(w2_ref.dtype), w2_ref[...],
                 preferred_element_type=jnp.float32)
    h2 = jnp.maximum(h2 + b2_ref[...], 0.0)

    y = jnp.dot(h2.astype(w3_ref.dtype), w3_ref[...],
                preferred_element_type=jnp.float32)
    o_ref[...] = (y + b3_ref[...]).astype(o_ref.dtype)


def prepare_params(params, use_bf16=True):
    """One-time weight/bias preparation (dtype cast, (1, out) biases)."""
    wdt = jnp.bfloat16 if use_bf16 else jnp.float32
    return {
        "w1": params["w1"].astype(wdt),                            # (11, 150)
        "b1": params["b1"].astype(jnp.float32).reshape(1, HIDDEN1),
        "w2": params["w2"].astype(wdt),                            # (150, 100)
        "b2": params["b2"].astype(jnp.float32).reshape(1, HIDDEN2),
        "w3": params["w3"].astype(wdt),                            # (100, 3)
        "b3": params["b3"].astype(jnp.float32).reshape(1, OUT_FEATURES),
    }


def network_forward(x, p, max_tile_b=DEFAULT_TILE_B):
    """x: (B, 11) float32.  p: prepare_params() output.  Returns (B, 3) f32.

    Weights are stored transposed vs. PyTorch: w has shape (in, out), so the
    kernel computes y = x @ w + b (identical math to nn.Linear).
    """
    B = x.shape[0]
    tile_b, num_tiles, b_pad = _tiling(B, max_tile_b)

    x_p = x if b_pad == B else jnp.pad(x, ((0, b_pad - B), (0, 0)))

    def resident(a):
        # Full-array block; same block index every grid step -> stays in VMEM.
        return pl.BlockSpec(a.shape, lambda i: (0, 0))

    out = pl.pallas_call(
        _mlp_kernel,
        out_shape=jax.ShapeDtypeStruct((b_pad, OUT_FEATURES), jnp.float32),
        grid=(num_tiles,),
        in_specs=[
            # Natural 11-feature width: last block dim == full array dim.
            pl.BlockSpec((tile_b, IN_FEATURES), lambda i: (i, 0)),
            resident(p["w1"]), resident(p["b1"]),
            resident(p["w2"]), resident(p["b2"]),
            resident(p["w3"]), resident(p["b3"]),
        ],
        # Natural 3-feature output width: last block dim == full array dim.
        out_specs=pl.BlockSpec((tile_b, OUT_FEATURES), lambda i: (i, 0)),
        compiler_params=pltpu.CompilerParams(
            dimension_semantics=("parallel",),
            vmem_limit_bytes=VMEM_LIMIT_BYTES,
        ),
    )(x_p, p["w1"], p["b1"], p["w2"], p["b2"], p["w3"], p["b3"])

    return out if b_pad == B else out[:B]


def init_params(key):
    """Deterministic init mimicking nn.Linear default (uniform +/- 1/sqrt(fan_in)).

    Weights stored as (in_features, out_features); biases as (1, out)."""
    ks = jax.random.split(key, 6)

    def linear(kw, kb, fan_in, fan_out):
        bound = 1.0 / np.sqrt(fan_in)
        w = jax.random.uniform(kw, (fan_in, fan_out), jnp.float32, -bound, bound)
        b = jax.random.uniform(kb, (1, fan_out), jnp.float32, -bound, bound)
        return w, b

    w1, b1 = linear(ks[0], ks[1], IN_FEATURES, HIDDEN1)
    w2, b2 = linear(ks[2], ks[3], HIDDEN1, HIDDEN2)
    w3, b3 = linear(ks[4], ks[5], HIDDEN2, OUT_FEATURES)
    return {"w1": w1, "b1": b1, "w2": w2, "b2": b2, "w3": w3, "b3": b3}


def reference_forward(x, p):
    h1 = jnp.maximum(x @ p["w1"] + p["b1"], 0.0)
    h2 = jnp.maximum(h1 @ p["w2"] + p["b2"], 0.0)
    return h2 @ p["w3"] + p["b3"]


if __name__ == "__main__":
    key = jax.random.PRNGKey(0)
    k_params, k_x1, k_x2 = jax.random.split(key, 3)
    raw_params = init_params(k_params)

    # --- bf16 MXU path, small single-tile batch -----------------------------
    p_bf16 = prepare_params(raw_params, use_bf16=True)
    batch = 8
    x = jax.random.normal(k_x1, (batch, IN_FEATURES), jnp.float32)
    out = jax.block_until_ready(network_forward(x, p_bf16))
    ref = reference_forward(x, raw_params)
    np.testing.assert_allclose(np.asarray(out), np.asarray(ref),
                               rtol=5e-2, atol=3e-2)
    assert out.shape == (batch, OUT_FEATURES)

    # --- f32 path, ragged batch over multiple grid steps --------------------
    p_f32 = prepare_params(raw_params, use_bf16=False)
    batch2 = 200
    x2 = jax.random.normal(k_x2, (batch2, IN_FEATURES), jnp.float32)
    out2 = jax.block_until_ready(network_forward(x2, p_f32, max_tile_b=64))
    ref2 = reference_forward(x2, raw_params)
    np.testing.assert_allclose(np.asarray(out2), np.asarray(ref2),
                               rtol=5e-2, atol=3e-2)
    assert out2.shape == (batch2, OUT_FEATURES)

    print("KERNEL_OK")
</pallas_src>

<mosaic_0001>
module attributes {stable_mosaic.version = 11 : i64} {
  func.func @_mlp_kernel(%arg0: i32, %arg1: memref<8x11xf32, #tpu.memory_space<vmem>>, %arg2: memref<11x150xbf16, #tpu.memory_space<vmem>>, %arg3: memref<1x150xf32, #tpu.memory_space<vmem>>, %arg4: memref<150x100xbf16, #tpu.memory_space<vmem>>, %arg5: memref<1x100xf32, #tpu.memory_space<vmem>>, %arg6: memref<100x3xbf16, #tpu.memory_space<vmem>>, %arg7: memref<1x3xf32, #tpu.memory_space<vmem>>, %arg8: memref<8x3xf32, #tpu.memory_space<vmem>>) attributes {dimension_semantics = [#tpu.dimension_semantics<parallel>], iteration_bounds = array<i64: 1>, scalar_prefetch = 0 : i64, scratch_operands = 0 : i64, tpu.core_type = #tpu.core_type<tc>, window_params = [{transform_indices = @transform_0, window_bounds = array<i64: 8, 11>}, {pipeline_mode = #tpu.pipeline_mode<synchronous>, transform_indices = @transform_1, window_bounds = array<i64: 11, 150>}, {pipeline_mode = #tpu.pipeline_mode<synchronous>, transform_indices = @transform_2, window_bounds = array<i64: 1, 150>}, {pipeline_mode = #tpu.pipeline_mode<synchronous>, transform_indices = @transform_3, window_bounds = array<i64: 150, 100>}, {pipeline_mode = #tpu.pipeline_mode<synchronous>, transform_indices = @transform_4, window_bounds = array<i64: 1, 100>}, {pipeline_mode = #tpu.pipeline_mode<synchronous>, transform_indices = @transform_5, window_bounds = array<i64: 100, 3>}, {pipeline_mode = #tpu.pipeline_mode<synchronous>, transform_indices = @transform_6, window_bounds = array<i64: 1, 3>}, {transform_indices = @transform_7, window_bounds = array<i64: 8, 3>}]} {
    %c0 = arith.constant 0 : index
    %c0_0 = arith.constant 0 : index
    %0 = vector.load %arg1[%c0, %c0_0] : memref<8x11xf32, #tpu.memory_space<vmem>>, vector<8x11xf32>
    %1 = arith.truncf %0 : vector<8x11xf32> to vector<8x11xbf16>
    %c0_1 = arith.constant 0 : index
    %c0_2 = arith.constant 0 : index
    %2 = vector.load %arg2[%c0_1, %c0_2] : memref<11x150xbf16, #tpu.memory_space<vmem>>, vector<11x150xbf16>
    %cst = arith.constant dense<0.000000e+00> : vector<8x150xf32>
    %3 = tpu.matmul %1, %2, %cst {dimension_numbers = #tpu.dot_dimension_numbers<[1], [0], [0], [1], [0, 0, 1, 1], [], []>} : vector<8x11xbf16>, vector<11x150xbf16>, vector<8x150xf32> -> vector<8x150xf32>
    %c0_3 = arith.constant 0 : index
    %c0_4 = arith.constant 0 : index
    %4 = vector.load %arg3[%c0_3, %c0_4] : memref<1x150xf32, #tpu.memory_space<vmem>>, vector<1x150xf32>
    %5 = vector.broadcast %4 : vector<1x150xf32> to vector<8x150xf32>
    %6 = arith.addf %3, %5 : vector<8x150xf32>
    %cst_5 = arith.constant 0.000000e+00 : f32
    %7 = vector.broadcast %cst_5 : f32 to vector<8x150xf32>
    %8 = arith.maximumf %6, %7 : vector<8x150xf32>
    %9 = arith.truncf %8 : vector<8x150xf32> to vector<8x150xbf16>
    %c0_6 = arith.constant 0 : index
    %c0_7 = arith.constant 0 : index
    %10 = vector.load %arg4[%c0_6, %c0_7] : memref<150x100xbf16, #tpu.memory_space<vmem>>, vector<150x100xbf16>
    %cst_8 = arith.constant dense<0.000000e+00> : vector<8x100xf32>
    %11 = tpu.matmul %9, %10, %cst_8 {dimension_numbers = #tpu.dot_dimension_numbers<[1], [0], [0], [1], [0, 0, 1, 1], [], []>} : vector<8x150xbf16>, vector<150x100xbf16>, vector<8x100xf32> -> vector<8x100xf32>
    %c0_9 = arith.constant 0 : index
    %c0_10 = arith.constant 0 : index
    %12 = vector.load %arg5[%c0_9, %c0_10] : memref<1x100xf32, #tpu.memory_space<vmem>>, vector<1x100xf32>
    %13 = vector.broadcast %12 : vector<1x100xf32> to vector<8x100xf32>
    %14 = arith.addf %11, %13 : vector<8x100xf32>
    %cst_11 = arith.constant 0.000000e+00 : f32
    %15 = vector.broadcast %cst_11 : f32 to vector<8x100xf32>
    %16 = arith.maximumf %14, %15 : vector<8x100xf32>
    %17 = arith.truncf %16 : vector<8x100xf32> to vector<8x100xbf16>
    %c0_12 = arith.constant 0 : index
    %c0_13 = arith.constant 0 : index
    %18 = vector.load %arg6[%c0_12, %c0_13] : memref<100x3xbf16, #tpu.memory_space<vmem>>, vector<100x3xbf16>
    %cst_14 = arith.constant dense<0.000000e+00> : vector<8x3xf32>
    %19 = tpu.matmul %17, %18, %cst_14 {dimension_numbers = #tpu.dot_dimension_numbers<[1], [0], [0], [1], [0, 0, 1, 1], [], []>} : vector<8x100xbf16>, vector<100x3xbf16>, vector<8x3xf32> -> vector<8x3xf32>
    %c0_15 = arith.constant 0 : index
    %c0_16 = arith.constant 0 : index
    %20 = vector.load %arg7[%c0_15, %c0_16] : memref<1x3xf32, #tpu.memory_space<vmem>>, vector<1x3xf32>
    %21 = vector.broadcast %20 : vector<1x3xf32> to vector<8x3xf32>
    %22 = arith.addf %19, %21 : vector<8x3xf32>
    %c0_17 = arith.constant 0 : index
    %c0_18 = arith.constant 0 : index
    %23 = vector.load %arg8[%c0_17, %c0_18] : memref<8x3xf32, #tpu.memory_space<vmem>>, vector<8x3xf32>
    tpu.vector_store %arg8[%c0_17, %c0_18], %22 {strides = array<i32>} : memref<8x3xf32, #tpu.memory_space<vmem>>, vector<8x3xf32>,
    return
  }
  func.func @transform_0(%arg0: i32) -> (i32, i32) {
    %c0_i32 = arith.constant 0 : i32
    %c0_i32_0 = arith.constant 0 : i32
    return %arg0, %c0_i32 : i32, i32
  }
  func.func @transform_1(%arg0: i32) -> (i32, i32) {
    %c0_i32 = arith.constant 0 : i32
    %c0_i32_0 = arith.constant 0 : i32
    %c0_i32_1 = arith.constant 0 : i32
    return %c0_i32, %c0_i32_0 : i32, i32
  }
  func.func @transform_2(%arg0: i32) -> (i32, i32) {
    %c0_i32 = arith.constant 0 : i32
    %c0_i32_0 = arith.constant 0 : i32
    %c0_i32_1 = arith.constant 0 : i32
    return %c0_i32, %c0_i32_0 : i32, i32
  }
  func.func @transform_3(%arg0: i32) -> (i32, i32) {
    %c0_i32 = arith.constant 0 : i32
    %c0_i32_0 = arith.constant 0 : i32
    %c0_i32_1 = arith.constant 0 : i32
    return %c0_i32, %c0_i32_0 : i32, i32
  }
  func.func @transform_4(%arg0: i32) -> (i32, i32) {
    %c0_i32 = arith.constant 0 : i32
    %c0_i32_0 = arith.constant 0 : i32
    %c0_i32_1 = arith.constant 0 : i32
    return %c0_i32, %c0_i32_0 : i32, i32
  }
  func.func @transform_5(%arg0: i32) -> (i32, i32) {
    %c0_i32 = arith.constant 0 : i32
    %c0_i32_0 = arith.constant 0 : i32
    %c0_i32_1 = arith.constant 0 : i32
    return %c0_i32, %c0_i32_0 : i32, i32
  }
  func.func @transform_6(%arg0: i32) -> (i32, i32) {
    %c0_i32 = arith.constant 0 : i32
    %c0_i32_0 = arith.constant 0 : i32
    %c0_i32_1 = arith.constant 0 : i32
    return %c0_i32, %c0_i32_0 : i32, i32
  }
  func.func @transform_7(%arg0: i32) -> (i32, i32) {
    %c0_i32 = arith.constant 0 : i32
    %c0_i32_0 = arith.constant 0 : i32
    return %arg0, %c0_i32 : i32, i32
  }
}

</mosaic_0001>

<llo_original>
// kernel: tpu_custom_call.1
$region0: #{tpu_custom_call.1}
  #allocation0 [shape = 'u32[]', space=smem, size = 0x4, offset = 0x4, fixed_abs, tag = 'smem constant byte address 0x4 - core index']
  #allocation1 [shape = 'u32[144,128]{1,0:T(1,128)}', space=vmem, size = 0x12000, scoped, tag = 'internal scratch']
  %s0 = inlined_call_operand.vmem [shape: f32[8,11], index: 0, kind: input, shape index: {}]
  %s1 = inlined_call_operand.vmem [shape: bf16[11,150], index: 1, kind: input, shape index: {}]
  %s2 = inlined_call_operand.vmem [shape: f32[1,150], index: 2, kind: input, shape index: {}]
  %s3 = inlined_call_operand.hbm [shape: bf16[150,100], index: 3, kind: input, shape index: {}]
  %s4 = inlined_call_operand.vmem [shape: f32[1,100], index: 4, kind: input, shape index: {}]
  %s5 = inlined_call_operand.vmem [shape: bf16[100,3], index: 5, kind: input, shape index: {}]
  %s6 = inlined_call_operand.vmem [shape: f32[1,3], index: 6, kind: input, shape index: {}]
  %s7 = inlined_call_operand.vmem [shape: f32[8,3], index: 7, kind: output, shape index: {}]
  %s8 = sld [smem:[#allocation0]]
  $region42: #{tpu_custom_call.1} parent=0
    _
  %s10 = ssub.s32 1, %s8
  %s11 = scalar_select 0, %s10, %s8
  $region1: #{tpu_custom_call.1} parent=0
    #allocation2 [shape = 'u8[38912]{0}', space=vmem, size = 0x9800, scoped, tag = 'input window, operand 3, single buffered']
    #allocation3 [shape = 's32[1]{0}', space=sflag, size = 0x4, scoped, tag = 'scoped memory for tpu_custom_call.1']
    %12 = vsyncpa [#allocation3], 0
    // Predicated region
    $region2: #{tpu_custom_call.1} parent=1 // pred_check
      _
    $region3: #{tpu_custom_call.1} parent=1 // pred_check_branch
      %14 = sbr.rel (0) target = $region5
    $region4: #{tpu_custom_call.1} parent=1 // pred_region
      _
    $region5: #{tpu_custom_call.1} parent=1 // pred_fallthru
      _
    // Predicated region
    $region6: #{tpu_custom_call.1} parent=1 // pred_check
      _
    $region7: #{tpu_custom_call.1} parent=1 // pred_check_branch
      %16 = sbr.rel (0) target = $region9
    $region8: #{tpu_custom_call.1} parent=1 // pred_region
      _
    $region9: #{tpu_custom_call.1} parent=1 // pred_fallthru
      _
    // Predicated region
    $region10: #{tpu_custom_call.1} parent=1 // pred_check
      _
    $region11: #{tpu_custom_call.1} parent=1 // pred_check_branch
      %18 = sbr.rel (0) target = $region13
    $region12: #{tpu_custom_call.1} parent=1 // pred_region
      _
    $region13: #{tpu_custom_call.1} parent=1 // pred_fallthru
      _
    // Predicated region
    $region14: #{tpu_custom_call.1} parent=1 // pred_check
      _
    $region15: #{tpu_custom_call.1} parent=1 // pred_check_branch
      %20 = sbr.rel (0) target = $region17
    $region16: #{tpu_custom_call.1} parent=1 // pred_region
      %s22 = ssub.s32 1216, 1216
      %23 = vsyncadd [#allocation3], %s22
      %s24 = sshll.u32 [#allocation2], 4
      %s25 = int_to_ptr.vmem [resolvable:$true] %s24
      %30 = dma.hbm_to_vmem [thread:$0]  %s3, 1216, %s25, [#allocation3], 64, 64, 4
    $region17: #{tpu_custom_call.1} parent=1 // pred_fallthru
      _
    // Predicated region
    $region18: #{tpu_custom_call.1} parent=1 // pred_check
      _
    $region19: #{tpu_custom_call.1} parent=1 // pred_check_branch
      %32 = sbr.rel (0) target = $region21
    $region20: #{tpu_custom_call.1} parent=1 // pred_region
      _
    $region21: #{tpu_custom_call.1} parent=1 // pred_fallthru
      _
    // Predicated region
    $region22: #{tpu_custom_call.1} parent=1 // pred_check
      _
    $region23: #{tpu_custom_call.1} parent=1 // pred_check_branch
      %34 = sbr.rel (0) target = $region25
    $region24: #{tpu_custom_call.1} parent=1 // pred_region
      _
    $region25: #{tpu_custom_call.1} parent=1 // pred_fallthru
      _
    // Predicated region
    $region26: #{tpu_custom_call.1} parent=1 // pred_check
      _
    $region27: #{tpu_custom_call.1} parent=1 // pred_check_branch
      %36 = sbr.rel (0) target = $region29
    $region28: #{tpu_custom_call.1} parent=1 // pred_region
      _
    $region29: #{tpu_custom_call.1} parent=1 // pred_fallthru
      _
    // Predicated region
    $region30: #{tpu_custom_call.1} parent=1 // pred_check
      _
    $region31: #{tpu_custom_call.1} parent=1 // pred_check_branch
      %38 = sbr.rel (0) target = $region33
    $region32: #{tpu_custom_call.1} parent=1 // pred_region
      %39 = dma.done [#allocation3], 1216
    $region33: #{tpu_custom_call.1} parent=1 // pred_fallthru
      _
    %v41 = vld [vmem:[%s0] sm:$0xff]
    %v42 = vpack.c.bf16 %v41, %v41
    %v43 = vld [vmem:[%s1] sm:$0xff]
    %v44 = vld [vmem:[%s1 + $0x8] sm:$0x33]
    %v45 = vld [vmem:[%s2] sm:$0x3]
    %v47 = vlaneseq
    %v48 = vshrl.u32 %v47, 7
    %v49 = vsub.s32 0, %v48
    %v50 = vrot.slane %v45, %v49
    %v51 = vlaneseq
    %v52 = vshrl.u32 %v51, 7
    %v53 = vsub.s32 1, %v52
    %v54 = vrot.slane %v45, %v53
    %v59 = vunpack.c.l.b16 %v43
    %v60 = vunpack.c.h.b16 %v43
    %v61 = vunpack.c.l.b16 %v44
    %v62 = vunpack.c.h.b16 %v44
    %v63 = vpack.c.b16 %v61, %v59
    %v64 = vpack.c.b16 %v62, %v60
    %vm65 = vcmask 89088
    %v67 = vsel %vm65, %v42, 0
    %vm69 = vcmask 1044480
    %vm70 = vcmask 1045504
    %v71 = vsel %vm69, 4294967295, 65535
    %v72 = vsel %vm70, %v71, 0
    %v74 = vand.u32 %v63, %v72
    %v77 = vand.u32 %v64, %v72
    %79 = vmatprep.subr.bf16.mxu0 %v77
    %80 = vmatpush1.bf16.msra.mxu0 %v74
    %81 = vmatprep.subr.bf16.mxu0 0
    %82 = vmatpush1.bf16.msra.mxu0 0
    %83 = vmatprep.subr.bf16.mxu0 0
    %84 = vmatpush1.bf16.msra.mxu0 0
    %85 = vmatprep.subr.bf16.mxu0 0
    %86 = vmatpush1.bf16.msra.mxu0 0
    %87 = vmatprep.subr.bf16.mxu0 0
    %88 = vmatpush1.bf16.msra.mxu0 0
    %89 = vmatprep.subr.bf16.mxu0 0
    %90 = vmatpush1.bf16.msra.mxu0 0
    %91 = vmatprep.subr.bf16.mxu0 0
    %92 = vmatpush1.bf16.msra.mxu0 0
    %93 = vmatprep.subr.bf16.mxu0 0
    %94 = vmatpush1.bf16.msra.mxu0 0
    %95 = vmatprep.subr.bf16.mxu0 0
    %96 = vmatpush1.bf16.msra.mxu0 0
    %97 = vmatprep.subr.bf16.mxu0 0
    %98 = vmatpush1.bf16.msra.mxu0 0
    %99 = vmatprep.subr.bf16.mxu0 0
    %100 = vmatpush1.bf16.msra.mxu0 0
    %101 = vmatprep.subr.bf16.mxu0 0
    %102 = vmatpush1.bf16.msra.mxu0 0
    %103 = vmatprep.subr.bf16.mxu0 0
    %104 = vmatpush1.bf16.msra.mxu0 0
    %105 = vmatprep.subr.bf16.mxu0 0
    %106 = vmatpush1.bf16.msra.mxu0 0
    %107 = vmatprep.subr.bf16.mxu0 0
    %108 = vmatpush1.bf16.msra.mxu0 0
    %109 = vmatprep.subr.bf16.mxu0 0
    %110 = vmatpush1.bf16.msra.mxu0 0
    %111 = vmatprep.mubr.bf16.mxu0 0
    %112 = vmatmul.mubr.bf16.gmra.mrb[0].mxu0 %v67
    %v113 = vpop.f32.mrb[0].mxu0
    %v114 = vadd.f32 %v50, %v113
    %v115 = vpop.f32.mrb[0].mxu0
    %v116 = vadd.f32 %v54, %v115
    %v117 = vpop.f32.mrb[0].mxu0
    %v118 = vpop.f32.mrb[0].mxu0
    %119 = vdwg.mxu0
    %v120 = vmax.f32 %v114, 0.0
    %v121 = vmax.f32 %v116, 0.0
    %v122 = vpack.c.bf16 %v120, %v120
    %v123 = vpack.c.bf16 %v121, %v121
    %v124 = vld [vmem:[#allocation2] sm:$0xf]
    %v125 = vld [vmem:[#allocation2 + $0x4] sm:$0xf]
    %v126 = vld [vmem:[#allocation2 + $0x8] sm:$0xf]
    %v127 = vld [vmem:[#allocation2 + $0xc] sm:$0xf]
    %v128 = vld [vmem:[#allocation2 + $0x10] sm:$0xf]
    %v129 = vld [vmem:[#allocation2 + $0x14] sm:$0xf]
    %v130 = vld [vmem:[#allocation2 + $0x18] sm:$0xf]
    %v131 = vld [vmem:[#allocation2 + $0x1c] sm:$0xf]
    %v132 = vld [vmem:[#allocation2 + $0x20] sm:$0xf]
    %v133 = vld [vmem:[#allocation2 + $0x24] sm:$0xf]
    %v134 = vld [vmem:[#allocation2 + $0x28] sm:$0xf]
    %v135 = vld [vmem:[#allocation2 + $0x2c] sm:$0xf]
    %v136 = vld [vmem:[#allocation2 + $0x30] sm:$0xf]
    %v137 = vld [vmem:[#allocation2 + $0x34] sm:$0xf]
    %v138 = vld [vmem:[#allocation2 + $0x38] sm:$0xf]
    %v139 = vld [vmem:[#allocation2 + $0x3c] sm:$0xf]
    %v140 = vld [vmem:[#allocation2 + $0x40] sm:$0xf]
    %v141 = vld [vmem:[#allocation2 + $0x44] sm:$0xf]
    %v142 = vld [vmem:[#allocation2 + $0x48] sm:$0x7]
    %v143 = vld [vmem:[%s4] sm:$0x1]
    %v145 = vlaneseq
    %v146 = vshrl.u32 %v145, 7
    %v147 = vsub.s32 0, %v146
    %v148 = vrot.slane %v143, %v147
    %v169 = vunpack.c.l.b16 %v124
    %v170 = vunpack.c.l.b16 %v125
    %v171 = vunpack.c.l.b16 %v126
    %v172 = vunpack.c.l.b16 %v127
    %v173 = vunpack.c.l.b16 %v128
    %v174 = vunpack.c.l.b16 %v129
    %v175 = vunpack.c.l.b16 %v130
    %v176 = vunpack.c.l.b16 %v131
    %v177 = vunpack.c.l.b16 %v132
    %v178 = vunpack.c.l.b16 %v133
    %v179 = vunpack.c.l.b16 %v134
    %v180 = vunpack.c.l.b16 %v135
    %v181 = vunpack.c.l.b16 %v136
    %v182 = vunpack.c.l.b16 %v137
    %v183 = vunpack.c.l.b16 %v138
    %v184 = vunpack.c.l.b16 %v139
    %v185 = vunpack.c.l.b16 %v140
    %v186 = vunpack.c.l.b16 %v141
    %v187 = vunpack.c.l.b16 %v142
    %v188 = vpack.c.b16 %v170, %v169
    %v189 = vpack.c.b16 %v172, %v171
    %v190 = vpack.c.b16 %v174, %v173
    %v191 = vpack.c.b16 %v176, %v175
    %v192 = vpack.c.b16 %v178, %v177
    %v193 = vpack.c.b16 %v180, %v179
    %v194 = vpack.c.b16 %v182, %v181
    %v195 = vpack.c.b16 %v184, %v183
    %v196 = vpack.c.b16 %v186, %v185
    %v197 = vpack.c.b16 %v187, %v187
    %vm207 = vcmask 179200
    %v209 = vsel %vm207, %v123, 0
    %vm211 = vcmask 1042432
    %v213 = vsel %vm211, %v197, 0
    %215 = vmatprep.subr.bf16.mxu0 0
    %216 = vmatpush1.bf16.msra.mxu0 %v188
    %217 = vmatprep.subr.bf16.mxu0 0
    %218 = vmatpush1.bf16.msra.mxu0 %v189
    %219 = vmatprep.subr.bf16.mxu0 0
    %220 = vmatpush1.bf16.msra.mxu0 %v190
    %221 = vmatprep.subr.bf16.mxu0 0
    %222 = vmatpush1.bf16.msra.mxu0 %v191
    %223 = vmatprep.subr.bf16.mxu0 0
    %224 = vmatpush1.bf16.msra.mxu0 %v192
    %225 = vmatprep.subr.bf16.mxu0 0
    %226 = vmatpush1.bf16.msra.mxu0 %v193
    %227 = vmatprep.subr.bf16.mxu0 0
    %228 = vmatpush1.bf16.msra.mxu0 %v194
    %229 = vmatprep.subr.bf16.mxu0 0
    %230 = vmatpush1.bf16.msra.mxu0 %v195
    %231 = vmatprep.subr.bf16.mxu0 0
    %232 = vmatpush1.bf16.msra.mxu0 %v196
    %233 = vmatprep.subr.bf16.mxu0 0
    %234 = vmatpush1.bf16.msra.mxu0 %v213
    %235 = vmatprep.subr.bf16.mxu0 0
    %236 = vmatpush1.bf16.msra.mxu0 0
    %237 = vmatprep.subr.bf16.mxu0 0
    %238 = vmatpush1.bf16.msra.mxu0 0
    %239 = vmatprep.subr.bf16.mxu0 0
    %240 = vmatpush1.bf16.msra.mxu0 0
    %241 = vmatprep.subr.bf16.mxu0 0
    %242 = vmatpush1.bf16.msra.mxu0 0
    %243 = vmatprep.subr.bf16.mxu0 0
    %244 = vmatpush1.bf16.msra.mxu0 0
    %245 = vmatprep.subr.bf16.mxu0 0
    %246 = vmatpush1.bf16.msra.mxu0 0
    %247 = vmatprep.mubr.bf16.mxu0 %v209
    %248 = vmatmul.mubr.bf16.gmra.mrb[0].mxu0 %v122
    %v249 = vpop.f32.mrb[0].mxu0
    %v250 = vadd.f32 %v148, %v249
    %v251 = vpop.f32.mrb[0].mxu0
    %v252 = vpop.f32.mrb[0].mxu0
    %v253 = vpop.f32.mrb[0].mxu0
    %254 = vdwg.mxu0
    %v255 = vmax.f32 %v250, 0.0
    %v256 = vpack.c.bf16 %v255, %v255
    %v257 = vld [vmem:[%s5] sm:$0xf]
    %v258 = vld [vmem:[%s5 + $0x4] sm:$0xf]
    %v259 = vld [vmem:[%s5 + $0x8] sm:$0xf]
    %v260 = vld [vmem:[%s5 + $0xc] sm:$0xf]
    %v261 = vld [vmem:[%s5 + $0x10] sm:$0xf]
    %v262 = vld [vmem:[%s5 + $0x14] sm:$0xf]
    %v263 = vld [vmem:[%s5 + $0x18] sm:$0xf]
    %v264 = vld [vmem:[%s5 + $0x1c] sm:$0xf]
    %v265 = vld [vmem:[%s5 + $0x20] sm:$0xf]
    %v266 = vld [vmem:[%s5 + $0x24] sm:$0xf]
    %v267 = vld [vmem:[%s5 + $0x28] sm:$0xf]
    %v268 = vld [vmem:[%s5 + $0x2c] sm:$0xf]
    %v269 = vld [vmem:[%s5 + $0x30] sm:$0x3]
    %v270 = vld [vmem:[%s6] sm:$0x1]
    %v272 = vlaneseq
    %v273 = vshrl.u32 %v272, 7
    %v274 = vsub.s32 0, %v273
    %v275 = vrot.slane %v270, %v274
    %v290 = vunpack.c.l.b16 %v257
    %v291 = vunpack.c.l.b16 %v258
    %v292 = vunpack.c.l.b16 %v259
    %v293 = vunpack.c.l.b16 %v260
    %v294 = vunpack.c.l.b16 %v261
    %v295 = vunpack.c.l.b16 %v262
    %v296 = vunpack.c.l.b16 %v263
    %v297 = vunpack.c.l.b16 %v264
    %v298 = vunpack.c.l.b16 %v265
    %v299 = vunpack.c.l.b16 %v266
    %v300 = vunpack.c.l.b16 %v267
    %v301 = vunpack.c.l.b16 %v268
    %v302 = vunpack.c.l.b16 %v269
    %v303 = vpack.c.b16 %v291, %v290
    %v304 = vpack.c.b16 %v293, %v292
    %v305 = vpack.c.b16 %v295, %v294
    %v306 = vpack.c.b16 %v297, %v296
    %v307 = vpack.c.b16 %v299, %v298
    %v308 = vpack.c.b16 %v301, %v300
    %v309 = vpack.c.b16 %v302, %v302
    %vm316 = vcmask 818176
    %v318 = vsel %vm316, %v256, 0
    %vm320 = vcmask 1041408
    %v322 = vsel %vm320, %v309, 0
    %324 = vmatprep.subr.bf16.mxu0 0
    %325 = vmatpush1.bf16.msra.mxu0 %v303
    %326 = vmatprep.subr.bf16.mxu0 0
    %327 = vmatpush1.bf16.msra.mxu0 %v304
    %328 = vmatprep.subr.bf16.mxu0 0
    %329 = vmatpush1.bf16.msra.mxu0 %v305
    %330 = vmatprep.subr.bf16.mxu0 0
    %331 = vmatpush1.bf16.msra.mxu0 %v306
    %332 = vmatprep.subr.bf16.mxu0 0
    %333 = vmatpush1.bf16.msra.mxu0 %v307
    %334 = vmatprep.subr.bf16.mxu0 0
    %335 = vmatpush1.bf16.msra.mxu0 %v308
    %336 = vmatprep.subr.bf16.mxu0 0
    %337 = vmatpush1.bf16.msra.mxu0 %v322
    %338 = vmatprep.subr.bf16.mxu0 0
    %339 = vmatpush1.bf16.msra.mxu0 0
    %340 = vmatprep.subr.bf16.mxu0 0
    %341 = vmatpush1.bf16.msra.mxu0 0
    %342 = vmatprep.subr.bf16.mxu0 0
    %343 = vmatpush1.bf16.msra.mxu0 0
    %344 = vmatprep.subr.bf16.mxu0 0
    %345 = vmatpush1.bf16.msra.mxu0 0
    %346 = vmatprep.subr.bf16.mxu0 0
    %347 = vmatpush1.bf16.msra.mxu0 0
    %348 = vmatprep.subr.bf16.mxu0 0
    %349 = vmatpush1.bf16.msra.mxu0 0
    %350 = vmatprep.subr.bf16.mxu0 0
    %351 = vmatpush1.bf16.msra.mxu0 0
    %352 = vmatprep.subr.bf16.mxu0 0
    %353 = vmatpush1.bf16.msra.mxu0 0
    %354 = vmatprep.subr.bf16.mxu0 0
    %355 = vmatpush1.bf16.msra.mxu0 0
    %356 = vmatprep.mubr.bf16.mxu0 0
    %357 = vmatmul.mubr.bf16.gmra.mrb[0].mxu0 %v318
    %v358 = vpop.f32.mrb[0].mxu0
    %v359 = vadd.f32 %v275, %v358
    %v360 = vpop.f32.mrb[0].mxu0
    %v361 = vpop.f32.mrb[0].mxu0
    %v362 = vpop.f32.mrb[0].mxu0
    %363 = vdwg.mxu0
    %vm364 = vcmask 23552
    %365 = vst.msk [vmem:[%s7] sm:$0xff] %vm364, %v359
    // Predicated region
    $region34: #{tpu_custom_call.1} parent=1 // pred_check
      _
    $region35: #{tpu_custom_call.1} parent=1 // pred_check_branch
      %367 = sbr.rel (0) target = $region37
    $region36: #{tpu_custom_call.1} parent=1 // pred_region
      _
    $region37: #{tpu_custom_call.1} parent=1 // pred_fallthru
      _
    // Predicated region
    $region38: #{tpu_custom_call.1} parent=1 // pred_check
      _
    $region39: #{tpu_custom_call.1} parent=1 // pred_check_branch
      %369 = sbr.rel (0) target = $region41
    $region40: #{tpu_custom_call.1} parent=1 // pred_region
      _
    $region41: #{tpu_custom_call.1} parent=1 // pred_fallthru
      _
    %370 = vsyncpa [#allocation3], 1

</llo_original>
